<compile_context>
chip_gen: v5e
topology: v5e:2x2
jax: 0.10.0
libtpu: 0.0.40
codegen_flags: <defaults>
</compile_context>

<pallas_src>
import functools

import jax
import jax.numpy as jnp
from jax.experimental import pallas as pl
from jax.experimental.pallas import tpu as pltpu


def _round_up(x: int, m: int) -> int:
    return ((x + m - 1) // m) * m


def _batch_tile(B: int, block_b: int) -> int:
    """Pick the batch tile: big, multiple of 16, >=2 grid steps when B allows it."""
    if B > 16:
        tb = min(block_b, _round_up(pl.cdiv(B, 2), 16))
    else:
        tb = _round_up(max(B, 1), 16)
    return max(16, tb)


def am_head_kernel(x_ref, w1_ref, b1_ref, w2_ref, b2_ref, out_ref):
    # x_ref : [TB, Hp]  CLS activations for this batch tile (hidden or compute dtype)
    # w1_ref: [Hp, Hp]  pre_classifier weight (compute dtype, VMEM-resident)
    # b1_ref: [1,  Hp]  pre_classifier bias (f32)
    # w2_ref: [Hp, Np]  ac_classifier weight (compute dtype, VMEM-resident)
    # b2_ref: [1,  Np]  ac_classifier bias (f32)
    # out_ref:[TB, Np]  logits (f32, lane-dense Np = round_up(num_outputs, 128))
    x = x_ref[...].astype(w1_ref.dtype)

    # pre_classifier: Linear(H, H) with f32 accumulation, then f32 bias + tanh (EUP).
    h = jnp.dot(x, w1_ref[...], preferred_element_type=jnp.float32) + b1_ref[...]
    h = jnp.tanh(h)

    # Dropout(p=0.1): identity in eval mode (deterministic forward).

    # ac_classifier: Linear(H, num_outputs); accumulate in f32, add f32 bias.
    h = h.astype(w2_ref.dtype)
    out = jnp.dot(h, w2_ref[...], preferred_element_type=jnp.float32) + b2_ref[...]
    out_ref[...] = out.astype(out_ref.dtype)


def prepare_am_head_params(w1, b1, w2, b2, *, compute_dtype=jnp.bfloat16):
    """One-time weight preparation (cast + lane-dense zero padding).

    Call this ONCE per model (outside the per-batch hot path).  Zero padding is
    exact: padded H columns of W1/b1 give tanh(0) = 0 and the corresponding zero
    rows of W2 contribute nothing; padded output columns are sliced off.
    """
    H = w1.shape[0]
    num_outputs = w2.shape[1]
    assert w1.shape == (H, H), "W1 must be [in, out] = [H, H] (torch weight.T)"
    assert w2.shape[0] == H, "W2 must be [in, out] = [H, num_outputs] (torch weight.T)"

    Hp = _round_up(H, 128)
    Np = _round_up(num_outputs, 128)

    w1_p = w1.astype(compute_dtype)
    w2_p = w2.astype(compute_dtype)
    b1_p = jnp.asarray(b1, jnp.float32).reshape(1, H)
    b2_p = jnp.asarray(b2, jnp.float32).reshape(1, num_outputs)

    if Hp != H:
        w1_p = jnp.pad(w1_p, ((0, Hp - H), (0, Hp - H)))
        b1_p = jnp.pad(b1_p, ((0, 0), (0, Hp - H)))
        w2_p = jnp.pad(w2_p, ((0, Hp - H), (0, 0)))
    if Np != num_outputs:
        w2_p = jnp.pad(w2_p, ((0, 0), (0, Np - num_outputs)))
        b2_p = jnp.pad(b2_p, ((0, 0), (0, Np - num_outputs)))

    return w1_p, b1_p, w2_p, b2_p


@functools.partial(jax.jit, static_argnames=("num_outputs", "block_b"))
def am_classifier_head(hidden_state, w1_p, b1_p, w2_p, b2_p, *,
                       num_outputs, block_b=512):
    """Classifier head: tanh(CLS @ W1 + b1) @ W2 + b2 (dropout = identity in eval).

    hidden_state: [B, L, H] backbone output.  w1_p/b1_p/w2_p/b2_p come from
    prepare_am_head_params (pre-cast, pre-padded, fetched once per call).
    """
    B, L, H = hidden_state.shape
    Hp = w1_p.shape[0]
    Np = w2_p.shape[1]
    compute_dtype = w1_p.dtype

    # Only the CLS token is needed -> slice in the wrapper so the pallas pipeline
    # never touches the other L-1 tokens (B*H bytes instead of B*L*H).
    cls = hidden_state[:, 0, :]

    TB = _batch_tile(B, block_b)
    Bp = _round_up(B, TB)

    if Hp != H or Bp != B:
        # One fused pad (+cast to halve the activation DMA); padded rows/cols are
        # zeros and the extra output rows are sliced off below.
        x = jnp.pad(cls.astype(compute_dtype), ((0, Bp - B), (0, Hp - H)))
    else:
        # Aligned case (e.g. H = 768/1024, B multiple of TB): no extra copy at all;
        # the kernel casts to the compute dtype on the fly.
        x = cls

    grid = (Bp // TB,)
    out = pl.pallas_call(
        am_head_kernel,
        out_shape=jax.ShapeDtypeStruct((Bp, Np), jnp.float32),
        grid=grid,
        in_specs=[
            pl.BlockSpec((TB, Hp), lambda i: (i, 0)),   # batch tile of CLS rows
            pl.BlockSpec((Hp, Hp), lambda i: (0, 0)),   # W1: fetched once, resident
            pl.BlockSpec((1, Hp), lambda i: (0, 0)),    # b1: resident
            pl.BlockSpec((Hp, Np), lambda i: (0, 0)),   # W2: resident
            pl.BlockSpec((1, Np), lambda i: (0, 0)),    # b2: resident
        ],
        out_specs=pl.BlockSpec((TB, Np), lambda i: (i, 0)),
        compiler_params=pltpu.CompilerParams(
            dimension_semantics=("parallel",),          # batch axis -> megacore split
        ),
    )(x, w1_p, b1_p, w2_p, b2_p)

    return out[:B, :num_outputs]


def reference_forward(hidden_state, w1, b1, w2, b2):
    pooler = hidden_state[:, 0, :]
    x = jnp.tanh(pooler @ w1 + b1.reshape(1, -1))
    return x @ w2 + b2.reshape(1, -1)


if __name__ == "__main__":
    key = jax.random.PRNGKey(0)
    k_h, k_w1, k_b1, k_w2, k_b2, k_h2 = jax.random.split(key, 6)

    # Small synthetic shapes consistent with the module:
    #   batch B=2, seq len L=8 (max_len), hidden H=32 (num_pre_output), num_outputs=4
    B, L, H, num_outputs = 2, 8, 32, 4

    # Backbone output (stand-in for l1(...)[0])
    hidden_state = jax.random.normal(k_h, (B, L, H), dtype=jnp.float32)

    # Weights in [in, out] layout (== torch_linear.weight.T), biases as rows.
    w1 = jax.random.normal(k_w1, (H, H), dtype=jnp.float32) * 0.05
    b1 = jax.random.normal(k_b1, (1, H), dtype=jnp.float32) * 0.01
    w2 = jax.random.normal(k_w2, (H, num_outputs), dtype=jnp.float32) * 0.05
    b2 = jax.random.normal(k_b2, (1, num_outputs), dtype=jnp.float32) * 0.01

    ref = reference_forward(hidden_state, w1, b1, w2, b2)

    # Default (perf) path: bf16 MXU inputs, f32 accumulation / bias / tanh.
    params_bf16 = prepare_am_head_params(w1, b1, w2, b2, compute_dtype=jnp.bfloat16)
    out = am_classifier_head(hidden_state, *params_bf16, num_outputs=num_outputs)
    out = jax.block_until_ready(out)
    assert out.shape == (B, num_outputs)
    assert jnp.allclose(out, ref, atol=3e-2, rtol=3e-2), "bf16 kernel mismatch vs reference"

    # Full f32 path matches the reference tightly (same kernel, compute_dtype=f32).
    params_f32 = prepare_am_head_params(w1, b1, w2, b2, compute_dtype=jnp.float32)
    out_f32 = jax.block_until_ready(
        am_classifier_head(hidden_state, *params_f32, num_outputs=num_outputs))
    assert jnp.allclose(out_f32, ref, atol=1e-5, rtol=1e-5), "f32 kernel mismatch vs reference"

    # Second config exercising the aligned (no activation pad/copy) path and a
    # multi-step "parallel" batch grid: B=64, H=128 -> TB=32, grid=(2,).
    B2, H2, NO2 = 64, 128, 4
    hs2 = jax.random.normal(k_h2, (B2, L, H2), dtype=jnp.float32)
    kk = jax.random.split(k_h2, 4)
    w1b = jax.random.normal(kk[0], (H2, H2), dtype=jnp.float32) * 0.05
    b1b = jax.random.normal(kk[1], (1, H2), dtype=jnp.float32) * 0.01
    w2b = jax.random.normal(kk[2], (H2, NO2), dtype=jnp.float32) * 0.05
    b2b = jax.random.normal(kk[3], (1, NO2), dtype=jnp.float32) * 0.01
    ref2 = reference_forward(hs2, w1b, b1b, w2b, b2b)
    p2 = prepare_am_head_params(w1b, b1b, w2b, b2b, compute_dtype=jnp.bfloat16)
    out2 = jax.block_until_ready(am_classifier_head(hs2, *p2, num_outputs=NO2))
    assert out2.shape == (B2, NO2)
    assert jnp.allclose(out2, ref2, atol=3e-2, rtol=3e-2), "aligned-path kernel mismatch"

    print("KERNEL_OK")
</pallas_src>

<mosaic_0001>
module attributes {stable_mosaic.version = 11 : i64} {
  func.func @am_head_kernel(%arg0: i32, %arg1: memref<16x128xbf16, #tpu.memory_space<vmem>>, %arg2: memref<128x128xbf16, #tpu.memory_space<vmem>>, %arg3: memref<1x128xf32, #tpu.memory_space<vmem>>, %arg4: memref<128x128xbf16, #tpu.memory_space<vmem>>, %arg5: memref<1x128xf32, #tpu.memory_space<vmem>>, %arg6: memref<16x128xf32, #tpu.memory_space<vmem>>) attributes {dimension_semantics = [#tpu.dimension_semantics<parallel>], iteration_bounds = array<i64: 1>, scalar_prefetch = 0 : i64, scratch_operands = 0 : i64, tpu.core_type = #tpu.core_type<tc>, window_params = [{transform_indices = @transform_0, window_bounds = array<i64: 16, 128>}, {pipeline_mode = #tpu.pipeline_mode<synchronous>, transform_indices = @transform_1, window_bounds = array<i64: 128, 128>}, {pipeline_mode = #tpu.pipeline_mode<synchronous>, transform_indices = @transform_2, window_bounds = array<i64: 1, 128>}, {pipeline_mode = #tpu.pipeline_mode<synchronous>, transform_indices = @transform_3, window_bounds = array<i64: 128, 128>}, {pipeline_mode = #tpu.pipeline_mode<synchronous>, transform_indices = @transform_4, window_bounds = array<i64: 1, 128>}, {transform_indices = @transform_5, window_bounds = array<i64: 16, 128>}]} {
    %c0 = arith.constant 0 : index
    %c0_0 = arith.constant 0 : index
    %0 = vector.load %arg1[%c0, %c0_0] : memref<16x128xbf16, #tpu.memory_space<vmem>>, vector<16x128xbf16>
    %c0_1 = arith.constant 0 : index
    %c0_2 = arith.constant 0 : index
    %1 = vector.load %arg2[%c0_1, %c0_2] : memref<128x128xbf16, #tpu.memory_space<vmem>>, vector<128x128xbf16>
    %cst = arith.constant dense<0.000000e+00> : vector<16x128xf32>
    %2 = tpu.matmul %0, %1, %cst {dimension_numbers = #tpu.dot_dimension_numbers<[1], [0], [0], [1], [0, 0, 1, 1], [], []>} : vector<16x128xbf16>, vector<128x128xbf16>, vector<16x128xf32> -> vector<16x128xf32>
    %c0_3 = arith.constant 0 : index
    %c0_4 = arith.constant 0 : index
    %3 = vector.load %arg3[%c0_3, %c0_4] : memref<1x128xf32, #tpu.memory_space<vmem>>, vector<1x128xf32>
    %4 = vector.broadcast %3 : vector<1x128xf32> to vector<16x128xf32>
    %5 = arith.addf %2, %4 : vector<16x128xf32>
    %6 = math.tanh %5 : vector<16x128xf32>
    %7 = arith.truncf %6 : vector<16x128xf32> to vector<16x128xbf16>
    %c0_5 = arith.constant 0 : index
    %c0_6 = arith.constant 0 : index
    %8 = vector.load %arg4[%c0_5, %c0_6] : memref<128x128xbf16, #tpu.memory_space<vmem>>, vector<128x128xbf16>
    %cst_7 = arith.constant dense<0.000000e+00> : vector<16x128xf32>
    %9 = tpu.matmul %7, %8, %cst_7 {dimension_numbers = #tpu.dot_dimension_numbers<[1], [0], [0], [1], [0, 0, 1, 1], [], []>} : vector<16x128xbf16>, vector<128x128xbf16>, vector<16x128xf32> -> vector<16x128xf32>
    %c0_8 = arith.constant 0 : index
    %c0_9 = arith.constant 0 : index
    %10 = vector.load %arg5[%c0_8, %c0_9] : memref<1x128xf32, #tpu.memory_space<vmem>>, vector<1x128xf32>
    %11 = vector.broadcast %10 : vector<1x128xf32> to vector<16x128xf32>
    %12 = arith.addf %9, %11 : vector<16x128xf32>
    %c0_10 = arith.constant 0 : index
    %c0_11 = arith.constant 0 : index
    %13 = vector.load %arg6[%c0_10, %c0_11] : memref<16x128xf32, #tpu.memory_space<vmem>>, vector<16x128xf32>
    tpu.vector_store %arg6[%c0_10, %c0_11], %12 {strides = array<i32>} : memref<16x128xf32, #tpu.memory_space<vmem>>, vector<16x128xf32>,
    return
  }
  func.func @transform_0(%arg0: i32) -> (i32, i32) {
    %c0_i32 = arith.constant 0 : i32
    %c0_i32_0 = arith.constant 0 : i32
    return %arg0, %c0_i32 : i32, i32
  }
  func.func @transform_1(%arg0: i32) -> (i32, i32) {
    %c0_i32 = arith.constant 0 : i32
    %c0_i32_0 = arith.constant 0 : i32
    %c0_i32_1 = arith.constant 0 : i32
    return %c0_i32, %c0_i32_0 : i32, i32
  }
  func.func @transform_2(%arg0: i32) -> (i32, i32) {
    %c0_i32 = arith.constant 0 : i32
    %c0_i32_0 = arith.constant 0 : i32
    %c0_i32_1 = arith.constant 0 : i32
    return %c0_i32, %c0_i32_0 : i32, i32
  }
  func.func @transform_3(%arg0: i32) -> (i32, i32) {
    %c0_i32 = arith.constant 0 : i32
    %c0_i32_0 = arith.constant 0 : i32
    %c0_i32_1 = arith.constant 0 : i32
    return %c0_i32, %c0_i32_0 : i32, i32
  }
  func.func @transform_4(%arg0: i32) -> (i32, i32) {
    %c0_i32 = arith.constant 0 : i32
    %c0_i32_0 = arith.constant 0 : i32
    %c0_i32_1 = arith.constant 0 : i32
    return %c0_i32, %c0_i32_0 : i32, i32
  }
  func.func @transform_5(%arg0: i32) -> (i32, i32) {
    %c0_i32 = arith.constant 0 : i32
    %c0_i32_0 = arith.constant 0 : i32
    return %arg0, %c0_i32 : i32, i32
  }
}

</mosaic_0001>

<llo_original>
// kernel: am_classifier_head.1
$region0: #{am_classifier_head.1}
  #allocation0 [shape = 'u32[]', space=smem, size = 0x4, offset = 0x4, fixed_abs, tag = 'smem constant byte address 0x4 - core index']
  #allocation1 [shape = 'u32[72,128]{1,0:T(1,128)}', space=vmem, size = 0x9000, scoped, tag = 'internal scratch']
  %s0 = inlined_call_operand.vmem [shape: bf16[16,128], index: 0, kind: input, shape index: {}]
  %s1 = inlined_call_operand.hbm [shape: bf16[128,128], index: 1, kind: input, shape index: {}]
  %s2 = inlined_call_operand.vmem [shape: f32[1,128], index: 2, kind: input, shape index: {}]
  %s3 = inlined_call_operand.hbm [shape: bf16[128,128], index: 3, kind: input, shape index: {}]
  %s4 = inlined_call_operand.vmem [shape: f32[1,128], index: 4, kind: input, shape index: {}]
  %s5 = inlined_call_operand.vmem [shape: f32[16,128], index: 5, kind: output, shape index: {}]
  %s6 = sld [smem:[#allocation0]]
  $region38: #{am_classifier_head.1} parent=0
    _
  %s8 = ssub.s32 1, %s6
  %s9 = scalar_select 0, %s8, %s6
  $region1: #{am_classifier_head.1} parent=0
    #allocation2 [shape = 'u8[32768]{0}', space=vmem, size = 0x8000, scoped, tag = 'input window, operand 1, single buffered']
    #allocation3 [shape = 's32[1]{0}', space=sflag, size = 0x4, scoped, tag = 'scoped memory for am_classifier_head.1']
    #allocation4 [shape = 'u8[32768]{0}', space=vmem, size = 0x8000, scoped, tag = 'input window, operand 3, single buffered']
    #allocation5 [shape = 's32[1]{0}', space=sflag, size = 0x4, scoped, tag = 'scoped memory for am_classifier_head.1']
    %10 = vsyncpa [#allocation3], 0
    %11 = vsyncpa [#allocation5], 0
    // Predicated region
    $region2: #{am_classifier_head.1} parent=1 // pred_check
      _
    $region3: #{am_classifier_head.1} parent=1 // pred_check_branch
      %13 = sbr.rel (0) target = $region5
    $region4: #{am_classifier_head.1} parent=1 // pred_region
      _
    $region5: #{am_classifier_head.1} parent=1 // pred_fallthru
      _
    // Predicated region
    $region6: #{am_classifier_head.1} parent=1 // pred_check
      _
    $region7: #{am_classifier_head.1} parent=1 // pred_check_branch
      %15 = sbr.rel (0) target = $region9
    $region8: #{am_classifier_head.1} parent=1 // pred_region
      %17 = vsyncadd [#allocation3], 0
      %s18 = sshll.u32 %s1, 4
      %s19 = int_to_ptr.hbm [resolvable:$true] %s18
      %s20 = sshll.u32 [#allocation2], 4
      %s21 = int_to_ptr.vmem [resolvable:$true] %s20
      %26 = dma.hbm_to_vmem [thread:$0]  %s19, 1024, %s21, [#allocation3], 64, 64, 4
    $region9: #{am_classifier_head.1} parent=1 // pred_fallthru
      _
    // Predicated region
    $region10: #{am_classifier_head.1} parent=1 // pred_check
      _
    $region11: #{am_classifier_head.1} parent=1 // pred_check_branch
      %28 = sbr.rel (0) target = $region13
    $region12: #{am_classifier_head.1} parent=1 // pred_region
      _
    $region13: #{am_classifier_head.1} parent=1 // pred_fallthru
      _
    // Predicated region
    $region14: #{am_classifier_head.1} parent=1 // pred_check
      _
    $region15: #{am_classifier_head.1} parent=1 // pred_check_branch
      %30 = sbr.rel (0) target = $region17
    $region16: #{am_classifier_head.1} parent=1 // pred_region
      %32 = vsyncadd [#allocation5], 0
      %s33 = sshll.u32 %s3, 4
      %s34 = int_to_ptr.hbm [resolvable:$true] %s33
      %s35 = sshll.u32 [#allocation4], 4
      %s36 = int_to_ptr.vmem [resolvable:$true] %s35
      %41 = dma.hbm_to_vmem [thread:$0]  %s34, 1024, %s36, [#allocation5], 64, 64, 4
    $region17: #{am_classifier_head.1} parent=1 // pred_fallthru
      _
    // Predicated region
    $region18: #{am_classifier_head.1} parent=1 // pred_check
      _
    $region19: #{am_classifier_head.1} parent=1 // pred_check_branch
      %43 = sbr.rel (0) target = $region21
    $region20: #{am_classifier_head.1} parent=1 // pred_region
      _
    $region21: #{am_classifier_head.1} parent=1 // pred_fallthru
      _
    // Predicated region
    $region22: #{am_classifier_head.1} parent=1 // pred_check
      _
    $region23: #{am_classifier_head.1} parent=1 // pred_check_branch
      %45 = sbr.rel (0) target = $region25
    $region24: #{am_classifier_head.1} parent=1 // pred_region
      %47 = dma.done [#allocation3], 1024
    $region25: #{am_classifier_head.1} parent=1 // pred_fallthru
      _
    // Predicated region
    $region26: #{am_classifier_head.1} parent=1 // pred_check
      _
    $region27: #{am_classifier_head.1} parent=1 // pred_check_branch
      %49 = sbr.rel (0) target = $region29
    $region28: #{am_classifier_head.1} parent=1 // pred_region
      %51 = dma.done [#allocation5], 1024
    $region29: #{am_classifier_head.1} parent=1 // pred_fallthru
      _
    %v52 = vld [vmem:[%s0] sm:$0xf]
    %v53 = vld [vmem:[%s0 + $0x4] sm:$0xf]
    %v54 = vld [vmem:[#allocation2] sm:$0xf]
    %v55 = vld [vmem:[#allocation2 + $0x4] sm:$0xf]
    %v56 = vld [vmem:[#allocation2 + $0x8] sm:$0xf]
    %v57 = vld [vmem:[#allocation2 + $0xc] sm:$0xf]
    %v58 = vld [vmem:[#allocation2 + $0x10] sm:$0xf]
    %v59 = vld [vmem:[#allocation2 + $0x14] sm:$0xf]
    %v60 = vld [vmem:[#allocation2 + $0x18] sm:$0xf]
    %v61 = vld [vmem:[#allocation2 + $0x1c] sm:$0xf]
    %v62 = vld [vmem:[#allocation2 + $0x20] sm:$0xf]
    %v63 = vld [vmem:[#allocation2 + $0x24] sm:$0xf]
    %v64 = vld [vmem:[#allocation2 + $0x28] sm:$0xf]
    %v65 = vld [vmem:[#allocation2 + $0x2c] sm:$0xf]
    %v66 = vld [vmem:[#allocation2 + $0x30] sm:$0xf]
    %v67 = vld [vmem:[#allocation2 + $0x34] sm:$0xf]
    %v68 = vld [vmem:[#allocation2 + $0x38] sm:$0xf]
    %v69 = vld [vmem:[#allocation2 + $0x3c] sm:$0xf]
    %v70 = vld [vmem:[%s2] sm:$0x1]
    %v72 = vperm.slane %v70, 0
    %v76 = vunpack.c.l.b16 %v52
    %v77 = vunpack.c.l.b16 %v53
    %v78 = vpack.c.b16 %v77, %v76
    %v96 = vunpack.c.l.b16 %v54
    %v97 = vunpack.c.l.b16 %v55
    %v98 = vunpack.c.l.b16 %v56
    %v99 = vunpack.c.l.b16 %v57
    %v100 = vunpack.c.l.b16 %v58
    %v101 = vunpack.c.l.b16 %v59
    %v102 = vunpack.c.l.b16 %v60
    %v103 = vunpack.c.l.b16 %v61
    %v104 = vunpack.c.l.b16 %v62
    %v105 = vunpack.c.l.b16 %v63
    %v106 = vunpack.c.l.b16 %v64
    %v107 = vunpack.c.l.b16 %v65
    %v108 = vunpack.c.l.b16 %v66
    %v109 = vunpack.c.l.b16 %v67
    %v110 = vunpack.c.l.b16 %v68
    %v111 = vunpack.c.l.b16 %v69
    %v112 = vpack.c.b16 %v97, %v96
    %v113 = vpack.c.b16 %v99, %v98
    %v114 = vpack.c.b16 %v101, %v100
    %v115 = vpack.c.b16 %v103, %v102
    %v116 = vpack.c.b16 %v105, %v104
    %v117 = vpack.c.b16 %v107, %v106
    %v118 = vpack.c.b16 %v109, %v108
    %v119 = vpack.c.b16 %v111, %v110
    %128 = vmatpush.bf16.msra.mxu0 %v119
    %129 = vmatpush.bf16.msra.mxu0 %v118
    %130 = vmatpush.bf16.msra.mxu0 %v117
    %131 = vmatpush.bf16.msra.mxu0 %v116
    %132 = vmatpush.bf16.msra.mxu0 %v115
    %133 = vmatpush.bf16.msra.mxu0 %v114
    %134 = vmatpush.bf16.msra.mxu0 %v113
    %135 = vmatpush.bf16.msra.mxu0 %v112
    %136 = vmatmul.bf16.gmra.mxu0 %v78
    %v137 = vpop.f32.mrf.mxu0
    %v138 = vadd.f32 %v72, %v137
    %v139 = vpop.f32.mrf.mxu0
    %v140 = vadd.f32 %v72, %v139
    %141 = vdwg.mxu0
    %v142 = vtanh.pop %v138
    %v143 = vtanh.pop %v140
    %v144 = vpack.c.bf16 %v143, %v142
    %v145 = vld [vmem:[#allocation4] sm:$0xf]
    %v146 = vld [vmem:[#allocation4 + $0x4] sm:$0xf]
    %v147 = vld [vmem:[#allocation4 + $0x8] sm:$0xf]
    %v148 = vld [vmem:[#allocation4 + $0xc] sm:$0xf]
    %v149 = vld [vmem:[#allocation4 + $0x10] sm:$0xf]
    %v150 = vld [vmem:[#allocation4 + $0x14] sm:$0xf]
    %v151 = vld [vmem:[#allocation4 + $0x18] sm:$0xf]
    %v152 = vld [vmem:[#allocation4 + $0x1c] sm:$0xf]
    %v153 = vld [vmem:[#allocation4 + $0x20] sm:$0xf]
    %v154 = vld [vmem:[#allocation4 + $0x24] sm:$0xf]
    %v155 = vld [vmem:[#allocation4 + $0x28] sm:$0xf]
    %v156 = vld [vmem:[#allocation4 + $0x2c] sm:$0xf]
    %v157 = vld [vmem:[#allocation4 + $0x30] sm:$0xf]
    %v158 = vld [vmem:[#allocation4 + $0x34] sm:$0xf]
    %v159 = vld [vmem:[#allocation4 + $0x38] sm:$0xf]
    %v160 = vld [vmem:[#allocation4 + $0x3c] sm:$0xf]
    %v161 = vld [vmem:[%s4] sm:$0x1]
    %v163 = vperm.slane %v161, 0
    %v181 = vunpack.c.l.b16 %v145
    %v182 = vunpack.c.l.b16 %v146
    %v183 = vunpack.c.l.b16 %v147
    %v184 = vunpack.c.l.b16 %v148
    %v185 = vunpack.c.l.b16 %v149
    %v186 = vunpack.c.l.b16 %v150
    %v187 = vunpack.c.l.b16 %v151
    %v188 = vunpack.c.l.b16 %v152
    %v189 = vunpack.c.l.b16 %v153
    %v190 = vunpack.c.l.b16 %v154
    %v191 = vunpack.c.l.b16 %v155
    %v192 = vunpack.c.l.b16 %v156
    %v193 = vunpack.c.l.b16 %v157
    %v194 = vunpack.c.l.b16 %v158
    %v195 = vunpack.c.l.b16 %v159
    %v196 = vunpack.c.l.b16 %v160
    %v197 = vpack.c.b16 %v182, %v181
    %v198 = vpack.c.b16 %v184, %v183
    %v199 = vpack.c.b16 %v186, %v185
    %v200 = vpack.c.b16 %v188, %v187
    %v201 = vpack.c.b16 %v190, %v189
    %v202 = vpack.c.b16 %v192, %v191
    %v203 = vpack.c.b16 %v194, %v193
    %v204 = vpack.c.b16 %v196, %v195
    %213 = vmatpush.bf16.msra.mxu0 %v204
    %214 = vmatpush.bf16.msra.mxu0 %v203
    %215 = vmatpush.bf16.msra.mxu0 %v202
    %216 = vmatpush.bf16.msra.mxu0 %v201
    %217 = vmatpush.bf16.msra.mxu0 %v200
    %218 = vmatpush.bf16.msra.mxu0 %v199
    %219 = vmatpush.bf16.msra.mxu0 %v198
    %220 = vmatpush.bf16.msra.mxu0 %v197
    %221 = vmatmul.bf16.gmra.mxu0 %v144
    %v222 = vpop.f32.mrf.mxu0
    %v223 = vadd.f32 %v163, %v222
    %v224 = vpop.f32.mrf.mxu0
    %v225 = vadd.f32 %v163, %v224
    %226 = vdwg.mxu0
    %227 = vst [vmem:[%s5] sm:$0xff] %v223
    %228 = vst [vmem:[%s5 + $0x8] sm:$0xff] %v225
    // Predicated region
    $region30: #{am_classifier_head.1} parent=1 // pred_check
      _
    $region31: #{am_classifier_head.1} parent=1 // pred_check_branch
      %230 = sbr.rel (0) target = $region33
    $region32: #{am_classifier_head.1} parent=1 // pred_region
      _
    $region33: #{am_classifier_head.1} parent=1 // pred_fallthru
      _
    // Predicated region
    $region34: #{am_classifier_head.1} parent=1 // pred_check
      _
    $region35: #{am_classifier_head.1} parent=1 // pred_check_branch
      %232 = sbr.rel (0) target = $region37
    $region36: #{am_classifier_head.1} parent=1 // pred_region
      _
    $region37: #{am_classifier_head.1} parent=1 // pred_fallthru
      _
    %233 = vsyncpa [#allocation3], 1
    %234 = vsyncpa [#allocation5], 1

</llo_original>
